<compile_context>
chip_gen: v7x
topology: tpu7x:2x2x1
jax: 0.10.0
libtpu: 0.0.40
codegen_flags: <defaults>
</compile_context>

<pallas_src>
import functools

import jax
import jax.numpy as jnp
from jax.experimental import pallas as pl
from jax.experimental.pallas import tpu as pltpu


def _round_up(x, m):
    return (x + m - 1) // m * m


def _multilinear_kernel(lang_ref, x_ref, w_ref, b_ref, o_ref, acc_ref):
    # lang_ref is only consumed by the index_maps (scalar-prefetch).
    del lang_ref
    k = pl.program_id(2)

    @pl.when(k == 0)
    def _init():
        acc_ref[...] = jnp.zeros_like(acc_ref)

    # x_ref: (tm, tk), w_ref: (tk, tn) -- weights stored pre-transposed, so no
    # in-kernel transpose; MXU-native RHS layout.
    acc_ref[...] += jnp.dot(
        x_ref[...], w_ref[...], preferred_element_type=jnp.float32
    )

    @pl.when(k == pl.num_programs(2) - 1)
    def _finalize():
        o_ref[...] = (
            acc_ref[...] + b_ref[...].astype(jnp.float32)
        ).astype(o_ref.dtype)


@functools.partial(jax.jit, static_argnames=("tm", "tn", "tk", "nj"))
def _multilinear_pallas(x, weights, biases, lang, *, tm, tn, tk, nj):
    Mp, Hp = x.shape
    ni = Mp // tm
    nk = Hp // tk
    grid = (nj, ni, nk)  # weight (vocab) tile is the slow axis.

    out_dtype = x.dtype
    bx = jnp.dtype(x.dtype).itemsize
    bw = jnp.dtype(weights.dtype).itemsize
    bb = jnp.dtype(biases.dtype).itemsize
    bo = jnp.dtype(out_dtype).itemsize
    vmem_bytes = 2 * (  # 2x headroom over the tile working set
        2 * tm * tk * bx          # double-buffered x tile
        + 2 * tk * tn * bw        # double-buffered weight tile
        + 2 * tn * bb             # double-buffered bias tile
        + 2 * tm * tn * bo        # double-buffered output tile
        + tm * tn * 4             # f32 accumulator scratch
    )
    vmem_bytes = int(min(max(vmem_bytes, 32 << 20), 64 << 20))

    return pl.pallas_call(
        _multilinear_kernel,
        out_shape=jax.ShapeDtypeStruct((Mp, nj * tn), out_dtype),
        grid_spec=pltpu.PrefetchScalarGridSpec(
            num_scalar_prefetch=1,
            grid=grid,
            in_specs=[
                # x: depends on (m_tile, k_tile) -> re-streamed per vocab tile.
                pl.BlockSpec((tm, tk), lambda j, i, k, lang: (i, k)),
                # W^T slab (L, Hp, Vp): depends on (vocab_tile, k_tile) only;
                # with nk == 1 each weight tile is DMA'd exactly once.
                pl.BlockSpec((None, tk, tn), lambda j, i, k, lang: (lang[0], k, j)),
                # bias (L, 1, Vp)
                pl.BlockSpec((None, 1, tn), lambda j, i, k, lang: (lang[0], 0, j)),
            ],
            out_specs=pl.BlockSpec((tm, tn), lambda j, i, k, lang: (i, j)),
            scratch_shapes=[pltpu.VMEM((tm, tn), jnp.float32)],
        ),
        compiler_params=pltpu.CompilerParams(
            dimension_semantics=("parallel", "parallel", "arbitrary"),
            vmem_limit_bytes=vmem_bytes,
        ),
    )(lang, x, weights, biases)


class MultiLinearPallas:
    """JAX/Pallas port of onmt MultiLinear.

    vocab_sizes: dict {lang_idx: vocab_size}.  vocab_size <= 0 -> Identity
    (host-side branch, mirroring PyTorch's host-side lang.item() dispatch).
    All projections with vocab_size > 0 are stored pre-transposed (W^T) and
    zero-padded into one slab of shape (L, Hp, Vp) indexed by the kernel.

    For v6e/v7x, pass dtype=jnp.bfloat16 to halve weight HBM traffic and VMEM
    footprint; the kernel always accumulates in f32.
    """

    def __init__(self, hidden_size, vocab_sizes, key, dtype=jnp.float32,
                 max_tm=256, max_tn=512, max_tk=1024):
        self.hidden_size = hidden_size
        self.vocab_sizes = dict(vocab_sizes)
        self.is_identity = {i: (v <= 0) for i, v in self.vocab_sizes.items()}
        active = [v for v in self.vocab_sizes.values() if v > 0]
        self.max_vocab = max(active) if active else 0
        self.dtype = dtype
        self.max_tm = max_tm

        H = hidden_size
        # K (hidden) tiling: keep H whole if it fits a single tile, otherwise
        # pad to a multiple of 128 and pick the largest tk <= max_tk dividing it.
        Hp8 = _round_up(H, 8)
        if Hp8 <= max_tk:
            Hp, tk = Hp8, Hp8
        else:
            Hp = _round_up(H, 128)
            q = Hp // 128
            d = max(dd for dd in range(1, max_tk // 128 + 1) if q % dd == 0)
            tk = 128 * d
        self.Hp, self.tk = Hp, tk

        # N (vocab) tiling: lane-dense tn up to max_tn; pad slab so the last
        # per-language tile is always in-bounds.
        if self.max_vocab > 0:
            tn = min(max_tn, _round_up(self.max_vocab, 128))
            Vp = _round_up(self.max_vocab, tn)
        else:
            tn, Vp = 0, 0
        self.tn, self.Vp = tn, Vp

        L = len(self.vocab_sizes)
        std = H ** (-0.5)                 # nn.init.normal_(weight, 0, H^-0.5)
        bound = 1.0 / (H ** 0.5)          # nn.Linear default bias init

        w = jnp.zeros((L, Hp, Vp), dtype)  # stored pre-transposed: W^T
        b = jnp.zeros((L, 1, Vp), dtype)
        for idx, vs in self.vocab_sizes.items():
            if vs <= 0:
                continue
            key, kw, kb = jax.random.split(key, 3)
            wi = std * jax.random.normal(kw, (H, vs), dtype)   # i.i.d. -> W^T directly
            bi = jax.random.uniform(kb, (vs,), dtype, -bound, bound)
            w = w.at[idx, :H, :vs].set(wi)
            b = b.at[idx, 0, :vs].set(bi)
        self.weights = w
        self.biases = b

    def __call__(self, x, lang):
        """x: (..., H); lang: python int (mirrors PyTorch's lang.item())."""
        lang = int(lang)
        if self.is_identity[lang]:
            return x  # nn.Identity branch

        lead_shape = x.shape[:-1]
        H = x.shape[-1]
        orig_dtype = x.dtype
        x2d = x.reshape(-1, H).astype(self.dtype)
        M = x2d.shape[0]

        # M tiling: tm <= max_tm, multiple of 8; pad rows with zeros if needed.
        tm = min(self.max_tm, _round_up(M, 8))
        Mp = _round_up(M, tm)
        pad_m, pad_h = Mp - M, self.Hp - H
        if pad_m or pad_h:
            x2d = jnp.pad(x2d, ((0, pad_m), (0, pad_h)))

        vs = self.vocab_sizes[lang]
        nj = -(-vs // self.tn)  # only this language's vocab tiles

        lang_arr = jnp.array([lang], dtype=jnp.int32)
        y = _multilinear_pallas(
            x2d, self.weights, self.biases, lang_arr,
            tm=tm, tn=self.tn, tk=self.tk, nj=nj,
        )
        y = y[:M, :vs].astype(orig_dtype)  # drop row/vocab padding
        return y.reshape(lead_shape + (vs,))


if __name__ == "__main__":
    key = jax.random.PRNGKey(0)
    k_param, k_x = jax.random.split(key)

    hidden_size = 32
    # lang 1 has vs=1000 -> exercises multi-tile vocab grid (nj=2) + padding;
    # lang 2 exercises the Identity branch.
    vocab_sizes = {0: 256, 1: 1000, 2: 0}
    model = MultiLinearPallas(hidden_size, vocab_sizes, k_param)

    batch, seq = 2, 8
    x = jax.random.normal(k_x, (batch, seq, hidden_size), jnp.float32)

    ok = True
    for lang in (0, 1):
        vs = vocab_sizes[lang]
        y = jax.block_until_ready(model(x, lang))
        # pure-JAX reference from the stored (pre-transposed) parameters
        w_t = model.weights[lang, :hidden_size, :vs]
        b = model.biases[lang, 0, :vs]
        y_ref = x.reshape(-1, hidden_size) @ w_t + b
        y_ref = y_ref.reshape(batch, seq, vs)
        ok &= bool(jnp.allclose(y, y_ref, atol=1e-5, rtol=1e-5))
        ok &= (y.shape == (batch, seq, vs))

    # Identity language
    y_id = jax.block_until_ready(model(x, 2))
    ok &= bool(jnp.allclose(y_id, x))

    if ok:
        print("KERNEL_OK")
    else:
        print("KERNEL_MISMATCH")
</pallas_src>

<mosaic_0001>
module attributes {stable_mosaic.version = 11 : i64} {
  func.func @_multilinear_kernel(%arg0: i32, %arg1: i32, %arg2: i32, %arg3: memref<1xi32, #tpu.memory_space<smem>>, %arg4: memref<16x32xf32, #tpu.memory_space<vmem>>, %arg5: memref<1x32x512xf32, #tpu.memory_space<vmem>>, %arg6: memref<1x1x512xf32, #tpu.memory_space<vmem>>, %arg7: memref<16x512xf32, #tpu.memory_space<vmem>>, %arg8: memref<16x512xf32, #tpu.memory_space<vmem>>) attributes {dimension_semantics = [#tpu.dimension_semantics<parallel>, #tpu.dimension_semantics<parallel>, #tpu.dimension_semantics<arbitrary>], iteration_bounds = array<i64: 1, 1, 1>, scalar_prefetch = 1 : i64, scratch_operands = 1 : i64, tpu.core_type = #tpu.core_type<tc>, window_params = [{transform_indices = @transform_0, window_bounds = array<i64: 16, 32>}, {transform_indices = @transform_1, window_bounds = array<i64: 1, 32, 512>}, {transform_indices = @transform_2, window_bounds = array<i64: 1, 1, 512>}, {transform_indices = @transform_3, window_bounds = array<i64: 16, 512>}]} {
    %c0_i32 = arith.constant 0 : i32
    %0 = arith.cmpi eq, %arg2, %c0_i32 : i32
    %1 = arith.extui %0 : i1 to i32
    %c0_i32_0 = arith.constant 0 : i32
    %2 = arith.cmpi ne, %1, %c0_i32_0 : i32
    scf.if %2 {
      %cst_11 = arith.constant 0.000000e+00 : f32
      %13 = vector.broadcast %cst_11 : f32 to vector<16x512xf32>
      %c0_12 = arith.constant 0 : index
      %c0_13 = arith.constant 0 : index
      %14 = vector.load %arg8[%c0_12, %c0_13] : memref<16x512xf32, #tpu.memory_space<vmem>>, vector<16x512xf32>
      tpu.vector_store %arg8[%c0_12, %c0_13], %13 {strides = array<i32>} : memref<16x512xf32, #tpu.memory_space<vmem>>, vector<16x512xf32>,
    } else {
    }
    %c0 = arith.constant 0 : index
    %c0_1 = arith.constant 0 : index
    %3 = vector.load %arg8[%c0, %c0_1] : memref<16x512xf32, #tpu.memory_space<vmem>>, vector<16x512xf32>
    %c0_2 = arith.constant 0 : index
    %c0_3 = arith.constant 0 : index
    %4 = vector.load %arg4[%c0_2, %c0_3] : memref<16x32xf32, #tpu.memory_space<vmem>>, vector<16x32xf32>
    %c0_4 = arith.constant 0 : index
    %c0_5 = arith.constant 0 : index
    %c0_6 = arith.constant 0 : index
    %5 = vector.load %arg5[%c0_4, %c0_5, %c0_6] : memref<1x32x512xf32, #tpu.memory_space<vmem>>, vector<1x32x512xf32>
    %6 = vector.shape_cast %5 : vector<1x32x512xf32> to vector<32x512xf32>
    %cst = arith.constant dense<0.000000e+00> : vector<16x512xf32>
    %7 = tpu.matmul %4, %6, %cst {dimension_numbers = #tpu.dot_dimension_numbers<[1], [0], [0], [1], [0, 0, 1, 1], [], []>} : vector<16x32xf32>, vector<32x512xf32>, vector<16x512xf32> -> vector<16x512xf32>
    %8 = arith.addf %3, %7 : vector<16x512xf32>
    %c0_7 = arith.constant 0 : index
    %c0_8 = arith.constant 0 : index
    %9 = vector.load %arg8[%c0_7, %c0_8] : memref<16x512xf32, #tpu.memory_space<vmem>>, vector<16x512xf32>
    tpu.vector_store %arg8[%c0_7, %c0_8], %8 {strides = array<i32>} : memref<16x512xf32, #tpu.memory_space<vmem>>, vector<16x512xf32>,
    %c0_i32_9 = arith.constant 0 : i32
    %10 = arith.cmpi eq, %arg2, %c0_i32_9 : i32
    %11 = arith.extui %10 : i1 to i32
    %c0_i32_10 = arith.constant 0 : i32
    %12 = arith.cmpi ne, %11, %c0_i32_10 : i32
    scf.if %12 {
      %c0_11 = arith.constant 0 : index
      %c0_12 = arith.constant 0 : index
      %13 = vector.load %arg8[%c0_11, %c0_12] : memref<16x512xf32, #tpu.memory_space<vmem>>, vector<16x512xf32>
      %c0_13 = arith.constant 0 : index
      %c0_14 = arith.constant 0 : index
      %c0_15 = arith.constant 0 : index
      %14 = vector.load %arg6[%c0_13, %c0_14, %c0_15] : memref<1x1x512xf32, #tpu.memory_space<vmem>>, vector<1x1x512xf32>
      %15 = vector.shape_cast %14 : vector<1x1x512xf32> to vector<1x512xf32>
      %16 = vector.broadcast %15 : vector<1x512xf32> to vector<16x512xf32>
      %17 = arith.addf %13, %16 : vector<16x512xf32>
      %c0_16 = arith.constant 0 : index
      %c0_17 = arith.constant 0 : index
      %18 = vector.load %arg7[%c0_16, %c0_17] : memref<16x512xf32, #tpu.memory_space<vmem>>, vector<16x512xf32>
      tpu.vector_store %arg7[%c0_16, %c0_17], %17 {strides = array<i32>} : memref<16x512xf32, #tpu.memory_space<vmem>>, vector<16x512xf32>,
    } else {
    }
    return
  }
  func.func @transform_0(%arg0: i32, %arg1: i32, %arg2: i32, %arg3: memref<1xi32, #tpu.memory_space<smem>>) -> (i32, i32) {
    %c0_i32 = arith.constant 0 : i32
    return %arg1, %arg2 : i32, i32
  }
  func.func @transform_1(%arg0: i32, %arg1: i32, %arg2: i32, %arg3: memref<1xi32, #tpu.memory_space<smem>>) -> (i32, i32, i32) {
    %c0 = arith.constant 0 : index
    %0 = memref.load %arg3[%c0] : memref<1xi32, #tpu.memory_space<smem>>
    %c0_i32 = arith.constant 0 : i32
    return %0, %arg2, %arg0 : i32, i32, i32
  }
  func.func @transform_2(%arg0: i32, %arg1: i32, %arg2: i32, %arg3: memref<1xi32, #tpu.memory_space<smem>>) -> (i32, i32, i32) {
    %c0 = arith.constant 0 : index
    %0 = memref.load %arg3[%c0] : memref<1xi32, #tpu.memory_space<smem>>
    %c0_i32 = arith.constant 0 : i32
    %c0_i32_0 = arith.constant 0 : i32
    return %0, %c0_i32, %arg0 : i32, i32, i32
  }
  func.func @transform_3(%arg0: i32, %arg1: i32, %arg2: i32, %arg3: memref<1xi32, #tpu.memory_space<smem>>) -> (i32, i32) {
    %c0_i32 = arith.constant 0 : i32
    return %arg1, %arg0 : i32, i32
  }
}

</mosaic_0001>

<llo_original>
// kernel: _multilinear_pallas.1
$region0: #{_multilinear_pallas.1}
  #allocation0 [shape = 'u32[]', space=smem, size = 0x4, offset = 0x4, fixed_abs, tag = 'smem constant byte address 0x4 - core index']
  #allocation1 [shape = 'u32[144,128]{1,0:T(1,128)}', space=vmem, size = 0x12000, scoped, tag = 'internal scratch']
  #allocation2 [shape = 'f32[16,512]{1,0:T(8,128)}', space=vmem, size = 0x8000, scoped, tag = 'scratch operand']
  #allocation3 [shape = 's32[1]{0}', space=sflag, size = 0x4, scoped, tag = 'scoped memory for _multilinear_pallas.1']
  #allocation4 [shape = 's32[1]{0:T(128)S(6)}', space=smem, size = 0x200, scoped, tag = 'prefetched SMEM operand 0']
  %s0 = inlined_call_operand.<no memory space> [shape: s32[1], index: 0, kind: input, shape index: {}]
  %s1 = inlined_call_operand.hbm [shape: f32[16,32], index: 1, kind: input, shape index: {}]
  %s2 = inlined_call_operand.hbm [shape: f32[3,32,1024], index: 2, kind: input, shape index: {}]
  %s3 = inlined_call_operand.hbm [shape: f32[3,1,1024], index: 3, kind: input, shape index: {}]
  %s4 = inlined_call_operand.hbm [shape: f32[16,512], index: 4, kind: output, shape index: {}]
  %s5 = sld [smem:[#allocation0]]
  $region42: #{_multilinear_pallas.1} parent=0
    _
  %s7 = ssub.s32 1, %s5
  %s8 = scalar_select 0, %s7, %s5
  %9 = sst [smem:[#allocation4]] %s0
  $region1: #{_multilinear_pallas.1} parent=0
    #allocation5 [shape = 'u8[8192]{0}', space=vmem, size = 0x2000, scoped, tag = 'input window, operand 1, single buffered']
    #allocation6 [shape = 's32[1]{0}', space=sflag, size = 0x4, scoped, tag = 'scoped memory for _multilinear_pallas.1']
    #allocation7 [shape = 's32[1]{0}', space=sflag, size = 0x4, scoped, tag = 'scoped memory for _multilinear_pallas.1']
    #allocation8 [shape = 'u8[65536]{0}', space=vmem, size = 0x10000, scoped, tag = 'input window, operand 2, single buffered']
    #allocation9 [shape = 's32[1]{0}', space=sflag, size = 0x4, scoped, tag = 'scoped memory for _multilinear_pallas.1']
    #allocation10 [shape = 'u8[2048]{0}', space=vmem, size = 0x800, scoped, tag = 'input window, operand 3, single buffered']
    #allocation11 [shape = 'u8[32768]{0}', space=vmem, size = 0x8000, scoped, tag = 'output window, operand 0, single buffered']
    %10 = vsyncpa [#allocation6], 0
    %11 = vsyncpa [#allocation9], 0
    %12 = vsyncpa [#allocation7], 0
    // Predicated region
    $region2: #{_multilinear_pallas.1} parent=1 // pred_check
      _
    $region3: #{_multilinear_pallas.1} parent=1 // pred_check_branch
      %14 = sbr.rel (0) target = $region5
    $region4: #{_multilinear_pallas.1} parent=1 // pred_region
      %s16 = ssub.s32 256, 256
      %17 = vsyncadd [#allocation6], %s16
      %s18 = sshll.u32 [#allocation5], 4
      %s19 = int_to_ptr.vmem [resolvable:$true] %s18
      %24 = dma.hbm_to_vmem [thread:$0]  %s1, 256, %s19, [#allocation6], 128, 128, 8
    $region5: #{_multilinear_pallas.1} parent=1 // pred_fallthru
      _
    // Predicated region
    $region6: #{_multilinear_pallas.1} parent=1 // pred_check
      _
    $region7: #{_multilinear_pallas.1} parent=1 // pred_check_branch
      %26 = sbr.rel (0) target = $region9
    $region8: #{_multilinear_pallas.1} parent=1 // pred_region
      %s27 = sld [smem:[#allocation4]]
      %s29 = ssub.s32 2048, 2048
      %30 = vsyncadd [#allocation9], %s29
      %s31 = smul.addr %s27, 32
      %s32 = smul.addr %s31, 128
      %s33 = scalar_lea.hbm %s2, %s32
      %s34 = sshll.u32 [#allocation8], 4
      %s35 = int_to_ptr.vmem [resolvable:$true] %s34
      %40 = dma.hbm_to_vmem [thread:$0]  %s33, 2048, %s35, [#allocation9], 1024, 512, 32
    $region9: #{_multilinear_pallas.1} parent=1 // pred_fallthru
      _
    // Predicated region
    $region10: #{_multilinear_pallas.1} parent=1 // pred_check
      _
    $region11: #{_multilinear_pallas.1} parent=1 // pred_check_branch
      %42 = sbr.rel (0) target = $region13
    $region12: #{_multilinear_pallas.1} parent=1 // pred_region
      %s43 = sld [smem:[#allocation4]]
      %s45 = ssub.s32 64, 64
      %46 = vsyncadd [#allocation9], %s45
      %s47 = smul.addr %s43, 8
      %s48 = smul.addr %s47, 16
      %s49 = scalar_lea.hbm %s3, %s48
      %s51 = sshll.u32 [#allocation10], 4
      %s52 = int_to_ptr.vmem [resolvable:$true] %s51
      %54 = dma.hbm_to_vmem [thread:$0]  %s49, 64, %s52, [#allocation9]
    $region13: #{_multilinear_pallas.1} parent=1 // pred_fallthru
      _
    // Predicated region
    $region14: #{_multilinear_pallas.1} parent=1 // pred_check
      _
    $region15: #{_multilinear_pallas.1} parent=1 // pred_check_branch
      %56 = sbr.rel (0) target = $region17
    $region16: #{_multilinear_pallas.1} parent=1 // pred_region
      %57 = dma.done [#allocation6], 256
    $region17: #{_multilinear_pallas.1} parent=1 // pred_fallthru
      _
    // Predicated region
    $region18: #{_multilinear_pallas.1} parent=1 // pred_check
      _
    $region19: #{_multilinear_pallas.1} parent=1 // pred_check_branch
      %59 = sbr.rel (0) target = $region21
    $region20: #{_multilinear_pallas.1} parent=1 // pred_region
      %60 = dma.done [#allocation9], 2048
    $region21: #{_multilinear_pallas.1} parent=1 // pred_fallthru
      _
    // Predicated region
    $region22: #{_multilinear_pallas.1} parent=1 // pred_check
      _
    $region23: #{_multilinear_pallas.1} parent=1 // pred_check_branch
      %62 = sbr.rel (0) target = $region25
    $region24: #{_multilinear_pallas.1} parent=1 // pred_region
      %63 = dma.done [#allocation9], 64
    $region25: #{_multilinear_pallas.1} parent=1 // pred_fallthru
      _
    %s64 = sld [smem:[#allocation4]]
    %s65 = sld [smem:[#allocation4]]
    %p66 = scmp.eq.s32.totalorder 0, 0
    // Predicated region
    $region26: #{_multilinear_pallas.1} parent=1 // pred_check
      %p67 = pneg %p66
    $region27: #{_multilinear_pallas.1} parent=1 // pred_check_branch
      %69 = sbr.rel (%p67) target = $region29
    $region28: #{_multilinear_pallas.1} parent=1 // pred_region
      %70 = vst [vmem:[#allocation2] sm:$0xff] 0.0
      %71 = vst [vmem:[#allocation2 + $0x8] sm:$0xff] 0.0
      %72 = vst [vmem:[#allocation2 + $0x10] sm:$0xff] 0.0
      %73 = vst [vmem:[#allocation2 + $0x18] sm:$0xff] 0.0
      %74 = vst [vmem:[#allocation2 + $0x20] sm:$0xff] 0.0
      %75 = vst [vmem:[#allocation2 + $0x28] sm:$0xff] 0.0
      %76 = vst [vmem:[#allocation2 + $0x30] sm:$0xff] 0.0
      %77 = vst [vmem:[#allocation2 + $0x38] sm:$0xff] 0.0
    $region29: #{_multilinear_pallas.1} parent=1 // pred_fallthru
      _
    %v78 = vld [vmem:[#allocation2] sm:$0xff]
    %v79 = vld [vmem:[#allocation2 + $0x8] sm:$0xff]
    %v80 = vld [vmem:[#allocation2 + $0x10] sm:$0xff]
    %v81 = vld [vmem:[#allocation2 + $0x18] sm:$0xff]
    %v82 = vld [vmem:[#allocation2 + $0x20] sm:$0xff]
    %v83 = vld [vmem:[#allocation2 + $0x28] sm:$0xff]
    %v84 = vld [vmem:[#allocation2 + $0x30] sm:$0xff]
    %v85 = vld [vmem:[#allocation2 + $0x38] sm:$0xff]
    %v86 = vld [vmem:[#allocation5] sm:$0xff]
    %v87 = vld [vmem:[#allocation5 + $0x8] sm:$0xff]
    %v88 = vld [vmem:[#allocation8] sm:$0xff]
    %v89 = vld [vmem:[#allocation8 + $0x8] sm:$0xff]
    %v90 = vld [vmem:[#allocation8 + $0x10] sm:$0xff]
    %v91 = vld [vmem:[#allocation8 + $0x18] sm:$0xff]
    %v92 = vld [vmem:[#allocation8 + $0x20] sm:$0xff]
    %v93 = vld [vmem:[#allocation8 + $0x28] sm:$0xff]
    %v94 = vld [vmem:[#allocation8 + $0x30] sm:$0xff]
    %v95 = vld [vmem:[#allocation8 + $0x38] sm:$0xff]
    %v96 = vld [vmem:[#allocation8 + $0x40] sm:$0xff]
    %v97 = vld [vmem:[#allocation8 + $0x48] sm:$0xff]
    %v98 = vld [vmem:[#allocation8 + $0x50] sm:$0xff]
    %v99 = vld [vmem:[#allocation8 + $0x58] sm:$0xff]
    %v100 = vld [vmem:[#allocation8 + $0x60] sm:$0xff]
    %v101 = vld [vmem:[#allocation8 + $0x68] sm:$0xff]
    %v102 = vld [vmem:[#allocation8 + $0x70] sm:$0xff]
    %v103 = vld [vmem:[#allocation8 + $0x78] sm:$0xff]
    %vm104 = vcmask 261120
    %v106 = vsel %vm104, %v86, 0
    %v109 = vsel %vm104, %v87, 0
    %111 = vmatprep.subr.mxu0 %v89
    %112 = vmatpush1.msra.mxu0 %v88
    %113 = vmatprep.subr.mxu0 %v93
    %114 = vmatpush1.msra.mxu0 %v92
    %115 = vmatprep.subr.mxu0 %v97
    %116 = vmatpush1.msra.mxu0 %v96
    %117 = vmatprep.subr.mxu0 %v101
    %118 = vmatpush1.msra.mxu0 %v100
    %119 = vmatprep.subr.mxu0 0.0
    %120 = vmatpush1.msra.mxu0 0.0
    %121 = vmatprep.subr.mxu0 0.0
    %122 = vmatpush1.msra.mxu0 0.0
    %123 = vmatprep.subr.mxu0 0.0
    %124 = vmatpush1.msra.mxu0 0.0
    %125 = vmatprep.subr.mxu0 0.0
    %126 = vmatpush1.msra.mxu0 0.0
    %127 = vmatprep.subr.mxu0 0.0
    %128 = vmatpush1.msra.mxu0 0.0
    %129 = vmatprep.subr.mxu0 0.0
    %130 = vmatpush1.msra.mxu0 0.0
    %131 = vmatprep.subr.mxu0 0.0
    %132 = vmatpush1.msra.mxu0 0.0
    %133 = vmatprep.subr.mxu0 0.0
    %134 = vmatpush1.msra.mxu0 0.0
    %135 = vmatprep.subr.mxu0 0.0
    %136 = vmatpush1.msra.mxu0 0.0
    %137 = vmatprep.subr.mxu0 0.0
    %138 = vmatpush1.msra.mxu0 0.0
    %139 = vmatprep.subr.mxu0 0.0
    %140 = vmatpush1.msra.mxu0 0.0
    %141 = vmatprep.subr.mxu0 0.0
    %142 = vmatpush1.msra.mxu0 0.0
    %143 = vmatprep.subr.mxu0 0.0
    %144 = vmatpush1.msra.mxu0 0.0
    %145 = vmatprep.subr.mxu0 0.0
    %146 = vmatpush1.msra.mxu0 0.0
    %147 = vmatprep.subr.mxu0 0.0
    %148 = vmatpush1.msra.mxu0 0.0
    %149 = vmatprep.subr.mxu0 0.0
    %150 = vmatpush1.msra.mxu0 0.0
    %151 = vmatprep.subr.mxu0 0.0
    %152 = vmatpush1.msra.mxu0 0.0
    %153 = vmatprep.subr.mxu0 0.0
    %154 = vmatpush1.msra.mxu0 0.0
    %155 = vmatprep.subr.mxu0 0.0
    %156 = vmatpush1.msra.mxu0 0.0
    %157 = vmatprep.subr.mxu0 0.0
    %158 = vmatpush1.msra.mxu0 0.0
    %159 = vmatprep.subr.mxu0 0.0
    %160 = vmatpush1.msra.mxu0 0.0
    %161 = vmatprep.subr.mxu0 0.0
    %162 = vmatpush1.msra.mxu0 0.0
    %163 = vmatprep.subr.mxu0 0.0
    %164 = vmatpush1.msra.mxu0 0.0
    %165 = vmatprep.subr.mxu0 0.0
    %166 = vmatpush1.msra.mxu0 0.0
    %167 = vmatprep.subr.mxu0 0.0
    %168 = vmatpush1.msra.mxu0 0.0
    %169 = vmatprep.subr.mxu0 0.0
    %170 = vmatpush1.msra.mxu0 0.0
    %171 = vmatprep.subr.mxu0 0.0
    %172 = vmatpush1.msra.mxu0 0.0
    %173 = vmatprep.subr.mxu0 0.0
    %174 = vmatpush1.msra.mxu0 0.0
    %175 = vmatprep.mubr.f32.mxu0 0.0
    %176 = vmatmul.mubr.f32.gmra.mrb[0].mxu0 %v106
    %v177 = vpop.f32.mrb[0].mxu0
    %v178 = vadd.f32 0.0, %v177
    %v179 = vpop.f32.mrb[0].mxu0
    %v180 = vadd.f32 0.0, %v179
    %181 = vmatprep.mubr.f32.mxu0 0.0
    %182 = vmatmul.mubr.f32.gmra.mrb[0].mxu0 %v109
    %v183 = vpop.f32.mrb[0].mxu0
    %v184 = vadd.f32 0.0, %v183
    %v185 = vpop.f32.mrb[0].mxu0
    %v186 = vadd.f32 0.0, %v185
    %187 = vdwg.mxu0
    %188 = vmatprep.subr.mxu0 %v91
    %189 = vmatpush1.msra.mxu0 %v90
    %190 = vmatprep.subr.mxu0 %v95
    %191 = vmatpush1.msra.mxu0 %v94
    %192 = vmatprep.subr.mxu0 %v99
    %193 = vmatpush1.msra.mxu0 %v98
    %194 = vmatprep.subr.mxu0 %v103
    %195 = vmatpush1.msra.mxu0 %v102
    %196 = vmatprep.subr.mxu0 0.0
    %197 = vmatpush1.msra.mxu0 0.0
    %198 = vmatprep.subr.mxu0 0.0
    %199 = vmatpush1.msra.mxu0 0.0
    %200 = vmatprep.subr.mxu0 0.0
    %201 = vmatpush1.msra.mxu0 0.0
    %202 = vmatprep.subr.mxu0 0.0
    %203 = vmatpush1.msra.mxu0 0.0
    %204 = vmatprep.subr.mxu0 0.0
    %205 = vmatpush1.msra.mxu0 0.0
    %206 = vmatprep.subr.mxu0 0.0
    %207 = vmatpush1.msra.mxu0 0.0
    %208 = vmatprep.subr.mxu0 0.0
    %209 = vmatpush1.msra.mxu0 0.0
    %210 = vmatprep.subr.mxu0 0.0
    %211 = vmatpush1.msra.mxu0 0.0
    %212 = vmatprep.subr.mxu0 0.0
    %213 = vmatpush1.msra.mxu0 0.0
    %214 = vmatprep.subr.mxu0 0.0
    %215 = vmatpush1.msra.mxu0 0.0
    %216 = vmatprep.subr.mxu0 0.0
    %217 = vmatpush1.msra.mxu0 0.0
    %218 = vmatprep.subr.mxu0 0.0
    %219 = vmatpush1.msra.mxu0 0.0
    %220 = vmatprep.subr.mxu0 0.0
    %221 = vmatpush1.msra.mxu0 0.0
    %222 = vmatprep.subr.mxu0 0.0
    %223 = vmatpush1.msra.mxu0 0.0
    %224 = vmatprep.subr.mxu0 0.0
    %225 = vmatpush1.msra.mxu0 0.0
    %226 = vmatprep.subr.mxu0 0.0
    %227 = vmatpush1.msra.mxu0 0.0
    %228 = vmatprep.subr.mxu0 0.0
    %229 = vmatpush1.msra.mxu0 0.0
    %230 = vmatprep.subr.mxu0 0.0
    %231 = vmatpush1.msra.mxu0 0.0
    %232 = vmatprep.subr.mxu0 0.0
    %233 = vmatpush1.msra.mxu0 0.0
    %234 = vmatprep.subr.mxu0 0.0
    %235 = vmatpush1.msra.mxu0 0.0
    %236 = vmatprep.subr.mxu0 0.0
    %237 = vmatpush1.msra.mxu0 0.0
    %238 = vmatprep.subr.mxu0 0.0
    %239 = vmatpush1.msra.mxu0 0.0
    %240 = vmatprep.subr.mxu0 0.0
    %241 = vmatpush1.msra.mxu0 0.0
    %242 = vmatprep.subr.mxu0 0.0
    %243 = vmatpush1.msra.mxu0 0.0
    %244 = vmatprep.subr.mxu0 0.0
    %245 = vmatpush1.msra.mxu0 0.0
    %246 = vmatprep.subr.mxu0 0.0
    %247 = vmatpush1.msra.mxu0 0.0
    %248 = vmatprep.subr.mxu0 0.0
    %249 = vmatpush1.msra.mxu0 0.0
    %250 = vmatprep.subr.mxu0 0.0
    %251 = vmatpush1.msra.mxu0 0.0
    %252 = vmatprep.mubr.f32.mxu0 0.0
    %253 = vmatmul.mubr.f32.gmra.mrb[0].mxu0 %v106
    %v254 = vpop.f32.mrb[0].mxu0
    %v255 = vadd.f32 0.0, %v254
    %v256 = vpop.f32.mrb[0].mxu0
    %v257 = vadd.f32 0.0, %v256
    %258 = vmatprep.mubr.f32.mxu0 0.0
    %259 = vmatmul.mubr.f32.gmra.mrb[0].mxu0 %v109
    %v260 = vpop.f32.mrb[0].mxu0
    %v261 = vadd.f32 0.0, %v260
    %v262 = vpop.f32.mrb[0].mxu0
    %v263 = vadd.f32 0.0, %v262
    %264 = vdwg.mxu0
    %v265 = vadd.f32 %v78, %v178
    %v266 = vadd.f32 %v79, %v180
    %v267 = vadd.f32 %v80, %v255
    %v268 = vadd.f32 %v81, %v257
    %v269 = vadd.f32 %v82, %v184
    %v270 = vadd.f32 %v83, %v186
    %v271 = vadd.f32 %v84, %v261
    %v272 = vadd.f32 %v85, %v263
    %273 = vst [vmem:[#allocation2] sm:$0xff] %v265
    %274 = vst [vmem:[#allocation2 + $0x8] sm:$0xff] %v266
    %275 = vst [vmem:[#allocation2 + $0x10] sm:$0xff] %v267
    %276 = vst [vmem:[#allocation2 + $0x18] sm:$0xff] %v268
    %277 = vst [vmem:[#allocation2 + $0x20] sm:$0xff] %v269
    %278 = vst [vmem:[#allocation2 + $0x28] sm:$0xff] %v270
    %279 = vst [vmem:[#allocation2 + $0x30] sm:$0xff] %v271
    %280 = vst [vmem:[#allocation2 + $0x38] sm:$0xff] %v272
    // Predicated region
    $region30: #{_multilinear_pallas.1} parent=1 // pred_check
      %p281 = pneg %p66
    $region31: #{_multilinear_pallas.1} parent=1 // pred_check_branch
      %283 = sbr.rel (%p281) target = $region33
    $region32: #{_multilinear_pallas.1} parent=1 // pred_region
      %v284 = vld [vmem:[#allocation2] sm:$0xff]
      %v285 = vld [vmem:[#allocation2 + $0x8] sm:$0xff]
      %v286 = vld [vmem:[#allocation2 + $0x10] sm:$0xff]
      %v287 = vld [vmem:[#allocation2 + $0x18] sm:$0xff]
      %v288 = vld [vmem:[#allocation2 + $0x20] sm:$0xff]
      %v289 = vld [vmem:[#allocation2 + $0x28] sm:$0xff]
      %v290 = vld [vmem:[#allocation2 + $0x30] sm:$0xff]
      %v291 = vld [vmem:[#allocation2 + $0x38] sm:$0xff]
      %v292 = vld [vmem:[#allocation10] sm:$0xf]
      %v294 = vlaneseq
      %v295 = vshrl.u32 %v294, 7
      %v296 = vsub.s32 0, %v295
      %v297 = vrot.slane %v292, %v296
      %v298 = vlaneseq
      %v299 = vshrl.u32 %v298, 7
      %v300 = vsub.s32 1, %v299
      %v301 = vrot.slane %v292, %v300
      %v302 = vlaneseq
      %v303 = vshrl.u32 %v302, 7
      %v304 = vsub.s32 2, %v303
      %v305 = vrot.slane %v292, %v304
      %v306 = vlaneseq
      %v307 = vshrl.u32 %v306, 7
      %v308 = vsub.s32 3, %v307
      %v309 = vrot.slane %v292, %v308
      %v314 = vadd.f32 %v284, %v297
      %v315 = vadd.f32 %v285, %v301
      %v316 = vadd.f32 %v286, %v305
      %v317 = vadd.f32 %v287, %v309
      %v318 = vadd.f32 %v288, %v297
      %v319 = vadd.f32 %v289, %v301
      %v320 = vadd.f32 %v290, %v305
      %v321 = vadd.f32 %v291, %v309
      %322 = vst [vmem:[#allocation11] sm:$0xff] %v314
      %323 = vst [vmem:[#allocation11 + $0x8] sm:$0xff] %v315
      %324 = vst [vmem:[#allocation11 + $0x10] sm:$0xff] %v316
      %325 = vst [vmem:[#allocation11 + $0x18] sm:$0xff] %v317
      %326 = vst [vmem:[#allocation11 + $0x20] sm:$0xff] %v318
      %327 = vst [vmem:[#allocation11 + $0x28] sm:$0xff] %v319
      %328 = vst [vmem:[#allocation11 + $0x30] sm:$0xff] %v320
      %329 = vst [vmem:[#allocation11 + $0x38] sm:$0xff] %v321
    $region33: #{_multilinear_pallas.1} parent=1 // pred_fallthru
      _
    // Predicated region
    $region34: #{_multilinear_pallas.1} parent=1 // pred_check
      _
    $region35: #{_multilinear_pallas.1} parent=1 // pred_check_branch
      %331 = sbr.rel (0) target = $region37
    $region36: #{_multilinear_pallas.1} parent=1 // pred_region
      %s333 = ssub.s32 1024, 1024
      %334 = vsyncadd [#allocation7], %s333
      %s335 = sshll.u32 [#allocation11], 4
      %s336 = int_to_ptr.vmem [resolvable:$true] %s335
      %341 = dma.vmem_to_hbm [thread:$0]  %s336, 1024, %s4, [#allocation7], 512, 512, 32
    $region37: #{_multilinear_pallas.1} parent=1 // pred_fallthru
      _
    // Predicated region
    $region38: #{_multilinear_pallas.1} parent=1 // pred_check
      _
    $region39: #{_multilinear_pallas.1} parent=1 // pred_check_branch
      %343 = sbr.rel (0) target = $region41
    $region40: #{_multilinear_pallas.1} parent=1 // pred_region
      %344 = dma.done [#allocation7], 1024
    $region41: #{_multilinear_pallas.1} parent=1 // pred_fallthru
      _
    %345 = vsyncpa [#allocation6], 1
    %346 = vsyncpa [#allocation9], 1
    %347 = vsyncpa [#allocation7], 1

</llo_original>
